<compile_context>
chip_gen: v5e
topology: v5e:2x2
jax: 0.10.0
libtpu: 0.0.40
codegen_flags: <defaults>
</compile_context>

<pallas_src>
import functools

import jax
import jax.numpy as jnp
from jax.experimental import pallas as pl
from jax.experimental.pallas import tpu as pltpu


def _ce_kernel(label_ref, logit_ref, out_ref, *, hw, thw, tiles_per_core, ragged):
    j = pl.program_id(2)

    x = logit_ref[...].astype(jnp.float32)     # (BN, C, THW): C on sublanes, THW on lanes
    lbl = label_ref[...].astype(jnp.float32)   # (BN, C, THW)

    # Stable log-softmax over the class (sublane) axis, fused with the label contraction:
    #   sum_c lbl*log_softmax(x) = sum_c lbl*x - (sum_c lbl) * (m + lse)
    m = jnp.max(x, axis=1, keepdims=True)                              # (BN, 1, THW)
    lse = jnp.log(jnp.sum(jnp.exp(x - m), axis=1, keepdims=True))      # (BN, 1, THW)
    partial = (jnp.sum(lbl * x, axis=1, keepdims=True)
               - jnp.sum(lbl, axis=1, keepdims=True) * (m + lse))      # (BN, 1, THW)

    if ragged:
        # Single column select on the (BN,1,THW) partial: out-of-bounds lane columns of the
        # last tile hold stale data, but C-axis reductions keep it confined per column.
        # Must be a select (not a 0/1 multiply) so NaN/Inf padding cannot leak via 0*NaN.
        jg = pl.program_id(1) * tiles_per_core + j
        lane = jax.lax.broadcasted_iota(jnp.int32, partial.shape, 2)
        partial = jnp.where(jg * thw + lane < hw, partial, 0.0)

    # Output block is the resident per-image vector accumulator across the HW-tile axis.
    @pl.when(j == 0)
    def _():
        out_ref[...] = jnp.zeros_like(out_ref)

    out_ref[...] += partial[None]              # (1, BN, 1, THW)


def _round_up(x, m):
    return ((x + m - 1) // m) * m


def _vmem_budgets():
    """(tile-sizing budget, compiler vmem_limit_bytes), generation aware."""
    try:
        cap = pltpu.get_tpu_info().vmem_capacity_bytes
    except Exception:  # unknown backend / interpret mode -> conservative
        cap = 0
    if cap >= 100 * 1024 * 1024:        # v5e / v6e: 128 MiB physical VMEM
        return 32 << 20, 96 << 20
    return 16 << 20, 40 << 20           # v7x (64 MiB per TC) or unknown: conservative


def _pick_block_sizes(N, C, HW, itemsize, *, budget_bytes, target_step_bytes=512 << 10):
    """Pick (BN images per step, 128-multiple spatial tile) under a VMEM budget."""
    # Sublane packing of the class axis: 8 for 32-bit, 16 for 16-bit dtypes.
    cpad = _round_up(C, 8 if itemsize >= 4 else 16)

    def per_lane(bn):
        return (2 * 2 * bn * cpad * itemsize   # 2 inputs x 2 pipeline buffers
                + 3 * bn * cpad * 4            # in-kernel f32 temporaries (upcasts, exp(x-m))
                + 2 * bn * 8 * 4)              # resident f32 output block (8 padded sublanes)

    thw = (budget_bytes // per_lane(1)) // 128 * 128
    thw = max(128, min(thw, _round_up(HW, 128)))

    # Batch several images per grid step when the per-step block is tiny (amortize overhead).
    bn = 1
    for d in range(1, N + 1):
        if N % d != 0:
            continue
        if per_lane(d) * thw > budget_bytes:
            break
        bn = d
        if 2 * d * C * thw * itemsize >= target_step_bytes:
            break
    return bn, thw


def cross_entropy_loss(label, logit, *, thw=None, bn=None):
    """label, logit: [N, C, H, W] float arrays (same shape, f32 or bf16). Returns scalar f32."""
    assert label.shape == logit.shape, "The logits and labels must be of the same size!"
    N, C, H, W = label.shape
    HW = H * W
    M = N * HW  # == sum(mask) for mask = ones_like(label[:, [0]])

    itemsize = max(jnp.dtype(label.dtype).itemsize, jnp.dtype(logit.dtype).itemsize)
    budget_bytes, vmem_limit = _vmem_budgets()
    auto_bn, auto_thw = _pick_block_sizes(N, C, HW, itemsize, budget_bytes=budget_bytes)
    if thw is None:
        thw = auto_thw
        if bn is None:
            bn = auto_bn
    elif bn is None:
        bn = 1
    assert N % bn == 0, "bn must divide the batch size"

    num_hw_tiles = pl.cdiv(HW, thw)
    ragged = (HW % thw) != 0
    nb = N // bn

    # If there is only one batch block, split the HW-tile axis across a second "parallel" axis
    # so both TensorCores on megacore parts (v7x) get work; harmless on single-core chips.
    core_split = 2 if (nb == 1 and num_hw_tiles >= 2 and num_hw_tiles % 2 == 0) else 1
    tiles_per_core = num_hw_tiles // core_split

    # Free reshape of contiguous NCHW -> (N, C, H*W); no transpose, no pad, no extra HBM pass.
    lbl3 = label.reshape(N, C, HW)
    lgt3 = logit.reshape(N, C, HW)

    kernel = functools.partial(_ce_kernel, hw=HW, thw=thw,
                               tiles_per_core=tiles_per_core, ragged=ragged)

    in_spec = pl.BlockSpec((bn, C, thw), lambda n, c, j: (n, 0, c * tiles_per_core + j))
    out_spec = pl.BlockSpec((1, bn, 1, thw), lambda n, c, j: (n * core_split + c, 0, 0, 0))

    partials = pl.pallas_call(
        kernel,
        out_shape=jax.ShapeDtypeStruct((nb * core_split, bn, 1, thw), jnp.float32),
        grid_spec=pltpu.PrefetchScalarGridSpec(
            num_scalar_prefetch=0,
            grid=(nb, core_split, tiles_per_core),
            in_specs=[in_spec, in_spec],
            out_specs=out_spec,
        ),
        compiler_params=pltpu.CompilerParams(
            dimension_semantics=("parallel", "parallel", "arbitrary"),
            vmem_limit_bytes=vmem_limit,
        ),
    )(lbl3, lgt3)

    # Tiny final reduction + normalization in plain JAX (fuses under jit).
    return -jnp.sum(partials) / jnp.float32(M)


def _reference(label, logit):
    log_prob = jax.nn.log_softmax(logit, axis=1)
    mask = jnp.ones_like(label[:, :1])
    return -jnp.sum(label * log_prob * mask) / jnp.sum(mask)


if __name__ == "__main__":
    key = jax.random.PRNGKey(0)
    k1, k2, k3, k4 = jax.random.split(key, 4)

    # Primary check: small NCHW f32 (exercises the multi-image-per-step path).
    N, C, H, W = 2, 4, 16, 16
    label = jax.nn.softmax(jax.random.normal(k1, (N, C, H, W), dtype=jnp.float32), axis=1)
    logit = jax.random.normal(k2, (N, C, H, W), dtype=jnp.float32)
    loss = jax.block_until_ready(jax.jit(cross_entropy_loss)(label, logit))
    ref = jax.block_until_ready(_reference(label, logit))
    assert jnp.allclose(loss, ref, rtol=1e-5, atol=1e-5), (loss, ref)

    # bf16 inputs (kernel upcasts internally; halves HBM traffic on this bandwidth-bound pass).
    lbl_bf = label.astype(jnp.bfloat16)
    lgt_bf = logit.astype(jnp.bfloat16)
    loss_bf = jax.block_until_ready(jax.jit(cross_entropy_loss)(lbl_bf, lgt_bf))
    ref_bf = _reference(lbl_bf.astype(jnp.float32), lgt_bf.astype(jnp.float32))
    assert jnp.allclose(loss_bf, ref_bf, rtol=1e-3, atol=1e-3), (loss_bf, ref_bf)

    # Ragged spatial tail + HW-tile split across the second "parallel" axis (N=1, forced tiles).
    N2, C2, H2, W2 = 1, 5, 30, 32
    label2 = jax.nn.softmax(jax.random.normal(k3, (N2, C2, H2, W2), dtype=jnp.float32), axis=1)
    logit2 = jax.random.normal(k4, (N2, C2, H2, W2), dtype=jnp.float32)
    fn2 = jax.jit(functools.partial(cross_entropy_loss, thw=128, bn=1))
    loss2 = jax.block_until_ready(fn2(label2, logit2))
    ref2 = jax.block_until_ready(_reference(label2, logit2))
    assert jnp.allclose(loss2, ref2, rtol=1e-5, atol=1e-5), (loss2, ref2)

    print("KERNEL_OK")
</pallas_src>

<mosaic_0001>
module attributes {stable_mosaic.version = 11 : i64} {
  func.func @_ce_kernel(%arg0: i32, %arg1: i32, %arg2: i32, %arg3: memref<2x4x256xf32, #tpu.memory_space<vmem>>, %arg4: memref<2x4x256xf32, #tpu.memory_space<vmem>>, %arg5: memref<1x2x1x256xf32, #tpu.memory_space<vmem>>) attributes {dimension_semantics = [#tpu.dimension_semantics<parallel>, #tpu.dimension_semantics<parallel>, #tpu.dimension_semantics<arbitrary>], iteration_bounds = array<i64: 1, 1, 1>, scalar_prefetch = 0 : i64, scratch_operands = 0 : i64, tpu.core_type = #tpu.core_type<tc>, window_params = [{transform_indices = @transform_0, window_bounds = array<i64: 2, 4, 256>}, {transform_indices = @transform_1, window_bounds = array<i64: 2, 4, 256>}, {transform_indices = @transform_2, window_bounds = array<i64: 1, 2, 1, 256>}]} {
    %c0 = arith.constant 0 : index
    %c0_0 = arith.constant 0 : index
    %c0_1 = arith.constant 0 : index
    %0 = vector.load %arg4[%c0, %c0_0, %c0_1] : memref<2x4x256xf32, #tpu.memory_space<vmem>>, vector<2x4x256xf32>
    %c0_2 = arith.constant 0 : index
    %c0_3 = arith.constant 0 : index
    %c0_4 = arith.constant 0 : index
    %1 = vector.load %arg3[%c0_2, %c0_3, %c0_4] : memref<2x4x256xf32, #tpu.memory_space<vmem>>, vector<2x4x256xf32>
    %cst = arith.constant dense<0xFF800000> : vector<2x256xf32>
    %2 = vector.multi_reduction <maximumf>, %0, %cst [1] : vector<2x4x256xf32> to vector<2x256xf32>
    %3 = vector.shape_cast %2 : vector<2x256xf32> to vector<2x1x256xf32>
    %4 = vector.broadcast %3 : vector<2x1x256xf32> to vector<2x4x256xf32>
    %5 = arith.subf %0, %4 : vector<2x4x256xf32>
    %6 = math.exp %5 : vector<2x4x256xf32>
    %cst_5 = arith.constant dense<0.000000e+00> : vector<2x256xf32>
    %7 = vector.multi_reduction <add>, %6, %cst_5 [1] : vector<2x4x256xf32> to vector<2x256xf32>
    %8 = vector.shape_cast %7 : vector<2x256xf32> to vector<2x1x256xf32>
    %9 = math.log %8 : vector<2x1x256xf32>
    %10 = arith.mulf %1, %0 : vector<2x4x256xf32>
    %cst_6 = arith.constant dense<0.000000e+00> : vector<2x256xf32>
    %11 = vector.multi_reduction <add>, %10, %cst_6 [1] : vector<2x4x256xf32> to vector<2x256xf32>
    %12 = vector.shape_cast %11 : vector<2x256xf32> to vector<2x1x256xf32>
    %cst_7 = arith.constant dense<0.000000e+00> : vector<2x256xf32>
    %13 = vector.multi_reduction <add>, %1, %cst_7 [1] : vector<2x4x256xf32> to vector<2x256xf32>
    %14 = vector.shape_cast %13 : vector<2x256xf32> to vector<2x1x256xf32>
    %15 = arith.addf %3, %9 : vector<2x1x256xf32>
    %16 = arith.mulf %14, %15 : vector<2x1x256xf32>
    %17 = arith.subf %12, %16 : vector<2x1x256xf32>
    %c0_i32 = arith.constant 0 : i32
    %18 = arith.cmpi eq, %arg2, %c0_i32 : i32
    %19 = arith.extui %18 : i1 to i32
    %c0_i32_8 = arith.constant 0 : i32
    %20 = arith.cmpi ne, %19, %c0_i32_8 : i32
    scf.if %20 {
      %cst_17 = arith.constant 0.000000e+00 : f32
      %25 = vector.broadcast %cst_17 : f32 to vector<1x2x1x256xf32>
      %c0_18 = arith.constant 0 : index
      %c0_19 = arith.constant 0 : index
      %c0_20 = arith.constant 0 : index
      %c0_21 = arith.constant 0 : index
      %26 = vector.load %arg5[%c0_18, %c0_19, %c0_20, %c0_21] : memref<1x2x1x256xf32, #tpu.memory_space<vmem>>, vector<1x2x1x256xf32>
      tpu.vector_store %arg5[%c0_18, %c0_19, %c0_20, %c0_21], %25 {strides = array<i32>} : memref<1x2x1x256xf32, #tpu.memory_space<vmem>>, vector<1x2x1x256xf32>,
    } else {
    }
    %c0_9 = arith.constant 0 : index
    %c0_10 = arith.constant 0 : index
    %c0_11 = arith.constant 0 : index
    %c0_12 = arith.constant 0 : index
    %21 = vector.load %arg5[%c0_9, %c0_10, %c0_11, %c0_12] : memref<1x2x1x256xf32, #tpu.memory_space<vmem>>, vector<1x2x1x256xf32>
    %22 = vector.shape_cast %17 : vector<2x1x256xf32> to vector<1x2x1x256xf32>
    %23 = arith.addf %21, %22 : vector<1x2x1x256xf32>
    %c0_13 = arith.constant 0 : index
    %c0_14 = arith.constant 0 : index
    %c0_15 = arith.constant 0 : index
    %c0_16 = arith.constant 0 : index
    %24 = vector.load %arg5[%c0_13, %c0_14, %c0_15, %c0_16] : memref<1x2x1x256xf32, #tpu.memory_space<vmem>>, vector<1x2x1x256xf32>
    tpu.vector_store %arg5[%c0_13, %c0_14, %c0_15, %c0_16], %23 {strides = array<i32>} : memref<1x2x1x256xf32, #tpu.memory_space<vmem>>, vector<1x2x1x256xf32>,
    return
  }
  func.func @transform_0(%arg0: i32, %arg1: i32, %arg2: i32) -> (i32, i32, i32) {
    %c1_i32 = arith.constant 1 : i32
    %0 = arith.muli %arg1, %c1_i32 : i32
    %1 = arith.addi %0, %arg2 : i32
    %c0_i32 = arith.constant 0 : i32
    %c0_i32_0 = arith.constant 0 : i32
    return %arg0, %c0_i32, %1 : i32, i32, i32
  }
  func.func @transform_1(%arg0: i32, %arg1: i32, %arg2: i32) -> (i32, i32, i32) {
    %c1_i32 = arith.constant 1 : i32
    %0 = arith.muli %arg1, %c1_i32 : i32
    %1 = arith.addi %0, %arg2 : i32
    %c0_i32 = arith.constant 0 : i32
    %c0_i32_0 = arith.constant 0 : i32
    return %arg0, %c0_i32, %1 : i32, i32, i32
  }
  func.func @transform_2(%arg0: i32, %arg1: i32, %arg2: i32) -> (i32, i32, i32, i32) {
    %c1_i32 = arith.constant 1 : i32
    %0 = arith.muli %arg0, %c1_i32 : i32
    %1 = arith.addi %0, %arg1 : i32
    %c0_i32 = arith.constant 0 : i32
    %c0_i32_0 = arith.constant 0 : i32
    %c0_i32_1 = arith.constant 0 : i32
    %c0_i32_2 = arith.constant 0 : i32
    return %1, %c0_i32, %c0_i32_0, %c0_i32_1 : i32, i32, i32, i32
  }
}

</mosaic_0001>

<llo_original>
// kernel: cross_entropy_loss.1
$region0: #{cross_entropy_loss.1}
  #allocation0 [shape = 'u32[]', space=smem, size = 0x4, offset = 0x4, fixed_abs, tag = 'smem constant byte address 0x4 - core index']
  #allocation1 [shape = 'u32[72,128]{1,0:T(1,128)}', space=vmem, size = 0x9000, scoped, tag = 'internal scratch']
  %s0 = inlined_call_operand.vmem [shape: f32[2,4,256], index: 0, kind: input, shape index: {}]
  %s1 = inlined_call_operand.vmem [shape: f32[2,4,256], index: 1, kind: input, shape index: {}]
  %s2 = inlined_call_operand.vmem [shape: f32[1,2,1,256], index: 2, kind: output, shape index: {}]
  %s3 = sld [smem:[#allocation0]]
  $region22: #{cross_entropy_loss.1} parent=0
    _
  %s5 = ssub.s32 1, %s3
  %s6 = scalar_select 0, %s5, %s3
  // Predicated region
  $region2: #{cross_entropy_loss.1} parent=0 // pred_check
    _
  $region3: #{cross_entropy_loss.1} parent=0 // pred_check_branch
    %8 = sbr.rel (0) target = $region5
  $region4: #{cross_entropy_loss.1} parent=0 // pred_region
    %s9 = sadd.s32 0, 0
    %s10 = smul.u32 2, %s9
    %p11 = scmp.lt.s32.totalorder %s10, 1
    %s12 = scalar_select %p11, %s10, 1
    %s13 = smul.addr %s12, 4
    %s14 = scalar_lea.vmem %s0, %s13
    %s15 = sadd.s32 0, 0
    %s16 = smul.u32 2, %s15
  $region5: #{cross_entropy_loss.1} parent=0 // pred_fallthru
    _
  // Predicated region
  $region6: #{cross_entropy_loss.1} parent=0 // pred_check
    _
  $region7: #{cross_entropy_loss.1} parent=0 // pred_check_branch
    %18 = sbr.rel (0) target = $region9
  $region8: #{cross_entropy_loss.1} parent=0 // pred_region
    %s19 = sadd.s32 0, 0
    %s20 = smul.u32 2, %s19
    %p21 = scmp.lt.s32.totalorder %s20, 1
    %s22 = scalar_select %p21, %s20, 1
    %s23 = smul.addr %s22, 4
    %s24 = scalar_lea.vmem %s1, %s23
    %s25 = sadd.s32 0, 0
    %s26 = smul.u32 2, %s25
  $region9: #{cross_entropy_loss.1} parent=0 // pred_fallthru
    _
  %s27 = sadd.s32 0, 0
  %s28 = smul.u32 2, %s27
  %p29 = scmp.lt.s32.totalorder %s28, 1
  %s30 = scalar_select %p29, %s28, 1
  %s31 = smul.addr %s30, 4
  %s32 = scalar_lea.vmem %s0, %s31
  %s33 = sadd.s32 0, 0
  %s34 = smul.u32 2, %s33
  %p35 = scmp.lt.s32.totalorder %s34, 1
  %s36 = scalar_select %p35, %s34, 1
  %s37 = smul.addr %s36, 4
  %s38 = scalar_lea.vmem %s1, %s37
  %s39 = sadd.s32 0, 0
  %p40 = scmp.lt.s32.totalorder %s39, 0
  %s41 = scalar_select %p40, %s39, 0
  %s42 = smul.addr %s41, 4
  %s43 = scalar_lea.vmem %s2, %s42
  %s44 = sadd.s32 0, 0
  %s45 = smul.u32 2, %s44
  %p46 = scmp.lt.s32.totalorder %s45, 1
  %s47 = scalar_select %p46, %s45, 1
  %s48 = smul.addr %s47, 4
  %s49 = scalar_lea.vmem %s0, %s48
  %s50 = sadd.s32 0, 0
  %s51 = smul.u32 2, %s50
  %s52 = sadd.s32 0, 0
  %s53 = smul.u32 2, %s52
  %p54 = scmp.lt.s32.totalorder %s53, 1
  %s55 = scalar_select %p54, %s53, 1
  %s56 = smul.addr %s55, 4
  %s57 = scalar_lea.vmem %s1, %s56
  %s58 = sadd.s32 0, 0
  %s59 = smul.u32 2, %s58
  %s60 = sadd.s32 0, 0
  %p61 = scmp.lt.s32.totalorder %s60, 0
  %s62 = scalar_select %p61, %s60, 0
  %s63 = smul.addr %s62, 4
  %s64 = scalar_lea.vmem %s2, %s63
  %s65 = sadd.s32 0, 0
  %v66 = vld [vmem:[%s57] sm:$0xff]
  %v67 = vld [vmem:[%s57 + $0x8] sm:$0xff]
  %v68 = vld [vmem:[%s49] sm:$0xff]
  %v69 = vld [vmem:[%s49 + $0x8] sm:$0xff]
  %72 = vst [vmem:[#allocation1] ss:$2 sm:$0xff] %v66
  %v73 = vld.sshfl [vmem:[#allocation1] sm:$0xff pattern:$0x75316420]
  %v74 = vld.sshfl [vmem:[#allocation1 + $0x8] sm:$0xff pattern:$0x75316420]
  %s75 = scalar_lea.vmem [#allocation1], 16
  %76 = vst [vmem:[%s75] ss:$2 sm:$0xff] %v67
  %v77 = vld.sshfl [vmem:[#allocation1 + $0x10] sm:$0xff pattern:$0x75316420]
  %v78 = vld.sshfl [vmem:[#allocation1 + $0x18] sm:$0xff pattern:$0x75316420]
  %vm83 = vcmask 1043456
  %v84 = vsel %vm83, %v73, -inf
  %v85 = vrot.slane %v84, 4
  %v86 = vmax.f32 %v84, %v85
  %v87 = vrot.slane %v86, 2
  %v88 = vmax.f32 %v86, %v87
  %v89 = vrot.slane %v88, 1
  %v90 = vmax.f32 %v88, %v89
  %v91 = vsel %vm83, %v74, -inf
  %v92 = vrot.slane %v91, 4
  %v93 = vmax.f32 %v91, %v92
  %v94 = vrot.slane %v93, 2
  %v95 = vmax.f32 %v93, %v94
  %v96 = vrot.slane %v95, 1
  %v97 = vmax.f32 %v95, %v96
  %v98 = vsel %vm83, %v77, -inf
  %v99 = vrot.slane %v98, 4
  %v100 = vmax.f32 %v98, %v99
  %v101 = vrot.slane %v100, 2
  %v102 = vmax.f32 %v100, %v101
  %v103 = vrot.slane %v102, 1
  %v104 = vmax.f32 %v102, %v103
  %v105 = vsel %vm83, %v78, -inf
  %v106 = vrot.slane %v105, 4
  %v107 = vmax.f32 %v105, %v106
  %v108 = vrot.slane %v107, 2
  %v109 = vmax.f32 %v107, %v108
  %v110 = vrot.slane %v109, 1
  %v111 = vmax.f32 %v109, %v110
  %v116 = vrot.slane %v97, 4
  %v117 = vrot.slane %v111, 4
  %v118 = vsel %vm83, %v90, %v116
  %v119 = vsel %vm83, %v104, %v117
  %v122 = vsub.f32 %v66, %v118
  %v123 = vsub.f32 %v67, %v119
  %v124 = vmul.f32 %v122, 1.442695
  %v125 = vpow.pop %v124
  %v126 = vmul.f32 %v123, 1.442695
  %v127 = vpow.pop %v126
  %130 = vst [vmem:[#allocation1] ss:$2 sm:$0xff] %v125
  %v131 = vld.sshfl [vmem:[#allocation1] sm:$0xff pattern:$0x75316420]
  %v132 = vld.sshfl [vmem:[#allocation1 + $0x8] sm:$0xff pattern:$0x75316420]
  %s133 = scalar_lea.vmem [#allocation1], 16
  %134 = vst [vmem:[%s133] ss:$2 sm:$0xff] %v127
  %v135 = vld.sshfl [vmem:[#allocation1 + $0x10] sm:$0xff pattern:$0x75316420]
  %v136 = vld.sshfl [vmem:[#allocation1 + $0x18] sm:$0xff pattern:$0x75316420]
  %v141 = vsel %vm83, %v131, 0.0
  %v142 = vrot.slane %v141, 4
  %v143 = vadd.f32 %v141, %v142
  %v144 = vrot.slane %v143, 2
  %v145 = vadd.f32 %v143, %v144
  %v146 = vrot.slane %v145, 1
  %v147 = vadd.f32 %v145, %v146
  %v148 = vsel %vm83, %v132, 0.0
  %v149 = vrot.slane %v148, 4
  %v150 = vadd.f32 %v148, %v149
  %v151 = vrot.slane %v150, 2
  %v152 = vadd.f32 %v150, %v151
  %v153 = vrot.slane %v152, 1
  %v154 = vadd.f32 %v152, %v153
  %v155 = vsel %vm83, %v135, 0.0
  %v156 = vrot.slane %v155, 4
  %v157 = vadd.f32 %v155, %v156
  %v158 = vrot.slane %v157, 2
  %v159 = vadd.f32 %v157, %v158
  %v160 = vrot.slane %v159, 1
  %v161 = vadd.f32 %v159, %v160
  %v162 = vsel %vm83, %v136, 0.0
  %v163 = vrot.slane %v162, 4
  %v164 = vadd.f32 %v162, %v163
  %v165 = vrot.slane %v164, 2
  %v166 = vadd.f32 %v164, %v165
  %v167 = vrot.slane %v166, 1
  %v168 = vadd.f32 %v166, %v167
  %v169 = vlog2.pop %v147
  %v170 = vmul.f32 %v169, 0.6931472
  %v171 = vlog2.pop %v154
  %v172 = vmul.f32 %v171, 0.6931472
  %v173 = vlog2.pop %v161
  %v174 = vmul.f32 %v173, 0.6931472
  %v175 = vlog2.pop %v168
  %v176 = vmul.f32 %v175, 0.6931472
  %v177 = vmul.f32 %v68, %v66
  %v178 = vmul.f32 %v69, %v67
  %181 = vst [vmem:[#allocation1] ss:$2 sm:$0xff] %v177
  %v182 = vld.sshfl [vmem:[#allocation1] sm:$0xff pattern:$0x75316420]
  %v183 = vld.sshfl [vmem:[#allocation1 + $0x8] sm:$0xff pattern:$0x75316420]
  %s184 = scalar_lea.vmem [#allocation1], 16
  %185 = vst [vmem:[%s184] ss:$2 sm:$0xff] %v178
  %v186 = vld.sshfl [vmem:[#allocation1 + $0x10] sm:$0xff pattern:$0x75316420]
  %v187 = vld.sshfl [vmem:[#allocation1 + $0x18] sm:$0xff pattern:$0x75316420]
  %v192 = vsel %vm83, %v182, 0.0
  %v193 = vrot.slane %v192, 4
  %v194 = vadd.f32 %v192, %v193
  %v195 = vrot.slane %v194, 2
  %v196 = vadd.f32 %v194, %v195
  %v197 = vrot.slane %v196, 1
  %v198 = vadd.f32 %v196, %v197
  %v199 = vsel %vm83, %v183, 0.0
  %v200 = vrot.slane %v199, 4
  %v201 = vadd.f32 %v199, %v200
  %v202 = vrot.slane %v201, 2
  %v203 = vadd.f32 %v201, %v202
  %v204 = vrot.slane %v203, 1
  %v205 = vadd.f32 %v203, %v204
  %v206 = vsel %vm83, %v186, 0.0
  %v207 = vrot.slane %v206, 4
  %v208 = vadd.f32 %v206, %v207
  %v209 = vrot.slane %v208, 2
  %v210 = vadd.f32 %v208, %v209
  %v211 = vrot.slane %v210, 1
  %v212 = vadd.f32 %v210, %v211
  %v213 = vsel %vm83, %v187, 0.0
  %v214 = vrot.slane %v213, 4
  %v215 = vadd.f32 %v213, %v214
  %v216 = vrot.slane %v215, 2
  %v217 = vadd.f32 %v215, %v216
  %v218 = vrot.slane %v217, 1
  %v219 = vadd.f32 %v217, %v218
  %222 = vst [vmem:[#allocation1] ss:$2 sm:$0xff] %v68
  %v223 = vld.sshfl [vmem:[#allocation1] sm:$0xff pattern:$0x75316420]
  %v224 = vld.sshfl [vmem:[#allocation1 + $0x8] sm:$0xff pattern:$0x75316420]
  %s225 = scalar_lea.vmem [#allocation1], 16
  %226 = vst [vmem:[%s225] ss:$2 sm:$0xff] %v69
  %v227 = vld.sshfl [vmem:[#allocation1 + $0x10] sm:$0xff pattern:$0x75316420]
  %v228 = vld.sshfl [vmem:[#allocation1 + $0x18] sm:$0xff pattern:$0x75316420]
  %v233 = vsel %vm83, %v223, 0.0
  %v234 = vrot.slane %v233, 4
  %v235 = vadd.f32 %v233, %v234
  %v236 = vrot.slane %v235, 2
  %v237 = vadd.f32 %v235, %v236
  %v238 = vrot.slane %v237, 1
  %v239 = vadd.f32 %v237, %v238
  %v240 = vsel %vm83, %v224, 0.0
  %v241 = vrot.slane %v240, 4
  %v242 = vadd.f32 %v240, %v241
  %v243 = vrot.slane %v242, 2
  %v244 = vadd.f32 %v242, %v243
  %v245 = vrot.slane %v244, 1
  %v246 = vadd.f32 %v244, %v245
  %v247 = vsel %vm83, %v227, 0.0
  %v248 = vrot.slane %v247, 4
  %v249 = vadd.f32 %v247, %v248
  %v250 = vrot.slane %v249, 2
  %v251 = vadd.f32 %v249, %v250
  %v252 = vrot.slane %v251, 1
  %v253 = vadd.f32 %v251, %v252
  %v254 = vsel %vm83, %v228, 0.0
  %v255 = vrot.slane %v254, 4
  %v256 = vadd.f32 %v254, %v255
  %v257 = vrot.slane %v256, 2
  %v258 = vadd.f32 %v256, %v257
  %v259 = vrot.slane %v258, 1
  %v260 = vadd.f32 %v258, %v259
  %v261 = vadd.f32 %v90, %v170
  %v262 = vadd.f32 %v97, %v172
  %v263 = vadd.f32 %v104, %v174
  %v264 = vadd.f32 %v111, %v176
  %v265 = vmul.f32 %v239, %v261
  %v266 = vmul.f32 %v246, %v262
  %v267 = vmul.f32 %v253, %v263
  %v268 = vmul.f32 %v260, %v264
  %v269 = vsub.f32 %v198, %v265
  %v270 = vsub.f32 %v205, %v266
  %v271 = vsub.f32 %v212, %v267
  %v272 = vsub.f32 %v219, %v268
  %p273 = scmp.eq.s32.totalorder 0, 0
  // Predicated region
  $region10: #{cross_entropy_loss.1} parent=0 // pred_check
    %p274 = pneg %p273
  $region11: #{cross_entropy_loss.1} parent=0 // pred_check_branch
    %276 = sbr.rel (%p274) target = $region13
  $region12: #{cross_entropy_loss.1} parent=0 // pred_region
    %v277 = vlaneseq
    %vm278 = vcmp.ge.s32.totalorder %v277, 0
    %vm279 = vcmp.lt.s32.totalorder %v277, 256
    %vm280 = vmand %vm278, %vm279
    %281 = vst.msk [vmem:[%s64] sm:$0x3] %vm280, 0.0
    %282 = vst.msk [vmem:[%s64 + $0x2] sm:$0x3] %vm280, 0.0
  $region13: #{cross_entropy_loss.1} parent=0 // pred_fallthru
    _
  %v283 = vld [vmem:[%s64] sm:$0x3]
  %v284 = vld [vmem:[%s64 + $0x2] sm:$0x3]
  %v289 = vrot.slane %v270, 7
  %v290 = vrot.slane %v272, 7
  %vm291 = vcmask 1040384
  %v292 = vsel %vm291, %v269, %v289
  %v293 = vsel %vm291, %v271, %v290
  %v296 = vadd.f32 %v283, %v292
  %v297 = vadd.f32 %v284, %v293
  %v298 = vlaneseq
  %vm299 = vcmp.ge.s32.totalorder %v298, 0
  %vm300 = vcmp.lt.s32.totalorder %v298, 256
  %vm301 = vmand %vm299, %vm300
  %302 = vst.msk [vmem:[%s64] sm:$0x3] %vm301, %v296
  %303 = vst.msk [vmem:[%s64 + $0x2] sm:$0x3] %vm301, %v297
  %s304 = sadd.s32 0, 0
  %p305 = scmp.lt.s32.totalorder %s304, 0
  %s306 = scalar_select %p305, %s304, 0
  %s307 = smul.addr %s306, 4
  %s308 = scalar_lea.vmem %s2, %s307
  // Predicated region
  $region14: #{cross_entropy_loss.1} parent=0 // pred_check
    _
  $region15: #{cross_entropy_loss.1} parent=0 // pred_check_branch
    %310 = sbr.rel (0) target = $region17
  $region16: #{cross_entropy_loss.1} parent=0 // pred_region
    %s311 = sadd.s32 0, 0
  $region17: #{cross_entropy_loss.1} parent=0 // pred_fallthru
    _
  // Predicated region
  $region18: #{cross_entropy_loss.1} parent=0 // pred_check
    _
  $region19: #{cross_entropy_loss.1} parent=0 // pred_check_branch
    %313 = sbr.rel (0) target = $region21
  $region20: #{cross_entropy_loss.1} parent=0 // pred_region
    %s314 = sadd.s32 0, 0
    %p315 = scmp.lt.s32.totalorder %s314, 0
    %s316 = scalar_select %p315, %s314, 0
    %s317 = smul.addr %s316, 4
    %s318 = scalar_lea.vmem %s2, %s317
  $region21: #{cross_entropy_loss.1} parent=0 // pred_fallthru
    _

</llo_original>
